<compile_context>
chip_gen: v6e
topology: v6e:2x2x1
jax: 0.10.0
libtpu: 0.0.40
codegen_flags: <defaults>
</compile_context>

<pallas_src>
import jax
import jax.numpy as jnp
from jax import lax
from jax.experimental import pallas as pl
from jax.experimental.pallas import tpu as pltpu


def _ceil_to(x, m):
    return ((x + m - 1) // m) * m


# ----------------------------- Pallas kernel ------------------------------ #
def lstm_kernel(xg_ref, whh_ref, h0_ref, c0_ref, wfc_ref, bfc_ref, out_ref):
    """Pure LSTM recurrence + fused final FC.

    xg_ref : (T*Bp, Gp)  pre-projected gate inputs x_t @ W_ih^T + b, gates
                         packed [i|f|g|o] at lane stride H
    whh_ref: (H, Gp)     recurrent weights, packed the same way
    h0/c0  : (Bp, H)
    wfc_ref: (H, Cp), bfc_ref: (1, Cp), out_ref: (Bp, Cp)
    """
    Bp, H = h0_ref.shape
    T = xg_ref.shape[0] // Bp            # static trip count

    whh = whh_ref[...]                   # (H, Gp): ~4 vregs, resident across loop

    def step(t, carry):
        h, c = carry
        row = pl.multiple_of(t * Bp, Bp)
        xg_t = xg_ref[pl.ds(row, Bp), :]                         # (Bp, Gp) from VMEM
        gates = xg_t + jnp.dot(h, whh, preferred_element_type=jnp.float32)
        sig = jax.nn.sigmoid(gates)      # one EUP pass over all packed gates
        th = jnp.tanh(gates)             # one EUP pass over all packed gates
        i_g = sig[:, 0 * H:1 * H]
        f_g = sig[:, 1 * H:2 * H]
        g_g = th[:, 2 * H:3 * H]
        o_g = sig[:, 3 * H:4 * H]
        c_new = f_g * c + i_g * g_g
        h_new = o_g * jnp.tanh(c_new)
        return h_new, c_new

    h, _ = lax.fori_loop(0, T, step, (h0_ref[...], c0_ref[...]), unroll=True)

    # Fused final linear layer on the last hidden state (lane-dense Cp output).
    out_ref[...] = (jnp.dot(h, wfc_ref[...], preferred_element_type=jnp.float32)
                    + bfc_ref[...])


# ------------------------------- wrapper ----------------------------------- #
def make_lstm_forward(params):
    """Packs/pads weights ONCE, returns a jitted forward(x_tokens, h0, c0)."""
    emb = params["embedding"]            # (V, E)
    w_ih = params["w_ih"]                # (4H, E)
    w_hh = params["w_hh"]                # (4H, H)
    b = params["b_ih"] + params["b_hh"]  # (4H,)
    w_fc = params["w_fc"]                # (C, H)
    b_fc = params["b_fc"]                # (C,)

    H = w_hh.shape[1]
    C = w_fc.shape[0]
    G = 4 * H
    Gp = _ceil_to(G, 128)                # packed-gate lane width (128 for H=32)
    Cp = _ceil_to(C, 128)                # lane-dense FC output

    # Fold the input projection + both biases into the embedding table.
    emb_proj = emb @ w_ih.T + b                                        # (V, 4H)
    emb_proj = jnp.zeros((emb.shape[0], Gp), jnp.float32).at[:, :G].set(emb_proj)

    whh_packed = jnp.zeros((H, Gp), jnp.float32).at[:, :G].set(w_hh.T)  # (H, Gp)
    wfc_pad = jnp.zeros((H, Cp), jnp.float32).at[:, :C].set(w_fc.T)
    bfc_pad = jnp.zeros((1, Cp), jnp.float32).at[0, :C].set(b_fc)

    @jax.jit
    def forward(x_tokens, h0, c0):
        B, T = x_tokens.shape
        Bp = _ceil_to(B, 8)              # one f32 sublane group

        # TODO(synk): the embedding gather stays in (jitted) JAX glue; the
        # data-dependent gather has no cheap rectangular BlockSpec form here.
        xg = jnp.take(emb_proj, x_tokens, axis=0)                # (B, T, Gp)
        xg = jnp.transpose(xg, (1, 0, 2))                        # (T, B, Gp)
        if Bp != B:
            xg = jnp.pad(xg, ((0, 0), (0, Bp - B), (0, 0)))
            h0p = jnp.pad(h0, ((0, Bp - B), (0, 0)))
            c0p = jnp.pad(c0, ((0, Bp - B), (0, 0)))
        else:
            h0p, c0p = h0, c0
        xg = xg.reshape(T * Bp, Gp)

        vmem = pl.BlockSpec(memory_space=pltpu.MemorySpace.VMEM)
        out_pad = pl.pallas_call(
            lstm_kernel,
            out_shape=jax.ShapeDtypeStruct((Bp, Cp), jnp.float32),
            in_specs=[vmem] * 6,
            out_specs=vmem,
        )(xg, whh_packed, h0p, c0p, wfc_pad, bfc_pad)

        out = out_pad[:B, :C]
        # PyTorch does .squeeze(0): no-op when B > 1; identical semantics.
        return jnp.squeeze(out, axis=0) if B == 1 else out

    return forward


# --------------------------- Pure-JAX reference ---------------------------- #
def lstm_forward_ref(x_tokens, params, h0, c0):
    emb = params["embedding"]
    w_ih, w_hh = params["w_ih"], params["w_hh"]
    b = params["b_ih"] + params["b_hh"]
    w_fc, b_fc = params["w_fc"], params["b_fc"]
    H = w_hh.shape[1]

    x_emb = emb[x_tokens]                     # (B, T, E)

    def step(carry, x_t):
        h, c = carry
        gates = x_t @ w_ih.T + h @ w_hh.T + b
        i = jax.nn.sigmoid(gates[:, 0 * H:1 * H])
        f = jax.nn.sigmoid(gates[:, 1 * H:2 * H])
        g = jnp.tanh(gates[:, 2 * H:3 * H])
        o = jax.nn.sigmoid(gates[:, 3 * H:4 * H])
        c = f * c + i * g
        h = o * jnp.tanh(c)
        return (h, c), None

    (h_T, _), _ = jax.lax.scan(step, (h0, c0), jnp.transpose(x_emb, (1, 0, 2)))
    out = h_T @ w_fc.T + b_fc
    return jnp.squeeze(out, axis=0) if out.shape[0] == 1 else out


# --------------------------------- main ------------------------------------ #
if __name__ == "__main__":
    # Module hyperparameters (num_layers=1, bidirectional=False)
    character_size = 32    # vocab
    embedding_dim = 16     # E
    hidden_size = 32       # H
    num_classes = 4        # C
    B, T = 2, 8

    key = jax.random.PRNGKey(0)
    ks = jax.random.split(key, 10)
    scale = 1.0 / jnp.sqrt(hidden_size)

    params = {
        "embedding": jax.random.normal(ks[0], (character_size, embedding_dim),
                                       jnp.float32),
        "w_ih": jax.random.uniform(ks[1], (4 * hidden_size, embedding_dim),
                                   jnp.float32, -scale, scale),
        "w_hh": jax.random.uniform(ks[2], (4 * hidden_size, hidden_size),
                                   jnp.float32, -scale, scale),
        "b_ih": jax.random.uniform(ks[3], (4 * hidden_size,), jnp.float32,
                                   -scale, scale),
        "b_hh": jax.random.uniform(ks[4], (4 * hidden_size,), jnp.float32,
                                   -scale, scale),
        "w_fc": jax.random.uniform(ks[5], (num_classes, hidden_size),
                                   jnp.float32, -scale, scale),
        "b_fc": jax.random.uniform(ks[6], (num_classes,), jnp.float32,
                                   -scale, scale),
    }

    # The PyTorch forward draws h0/c0 with torch.randn each call; here we draw
    # them deterministically (same distribution) so the run is reproducible.
    h0 = jax.random.normal(ks[7], (B, hidden_size), jnp.float32)
    c0 = jax.random.normal(ks[8], (B, hidden_size), jnp.float32)

    x_tokens = jax.random.randint(ks[9], (B, T), 0, character_size, jnp.int32)

    lstm_forward = make_lstm_forward(params)   # one-time weight packing + jit
    out = jax.block_until_ready(lstm_forward(x_tokens, h0, c0))
    ref = jax.block_until_ready(lstm_forward_ref(x_tokens, params, h0, c0))

    assert out.shape == (B, num_classes), out.shape
    assert jnp.allclose(out, ref, atol=1e-5, rtol=1e-5), (out, ref)
    print("KERNEL_OK")
</pallas_src>

<mosaic_0001>
module attributes {stable_mosaic.version = 11 : i64} {
  func.func @lstm_kernel(%arg0: memref<64x128xf32, #tpu.memory_space<vmem>>, %arg1: memref<32x128xf32, #tpu.memory_space<vmem>>, %arg2: memref<8x32xf32, #tpu.memory_space<vmem>>, %arg3: memref<8x32xf32, #tpu.memory_space<vmem>>, %arg4: memref<32x128xf32, #tpu.memory_space<vmem>>, %arg5: memref<1x128xf32, #tpu.memory_space<vmem>>, %arg6: memref<8x128xf32, #tpu.memory_space<vmem>>) attributes {dimension_semantics = [], scalar_prefetch = 0 : i64, scratch_operands = 0 : i64, tpu.core_type = #tpu.core_type<tc>} {
    %c0 = arith.constant 0 : index
    %c0_0 = arith.constant 0 : index
    %0 = vector.load %arg1[%c0, %c0_0] : memref<32x128xf32, #tpu.memory_space<vmem>>, vector<32x128xf32>
    %c0_1 = arith.constant 0 : index
    %c0_2 = arith.constant 0 : index
    %1 = vector.load %arg2[%c0_1, %c0_2] : memref<8x32xf32, #tpu.memory_space<vmem>>, vector<8x32xf32>
    %c0_3 = arith.constant 0 : index
    %c0_4 = arith.constant 0 : index
    %2 = vector.load %arg3[%c0_3, %c0_4] : memref<8x32xf32, #tpu.memory_space<vmem>>, vector<8x32xf32>
    %c0_i32 = arith.constant 0 : i32
    %c8_i32 = arith.constant 8 : i32
    %3 = arith.muli %c0_i32, %c8_i32 : i32
    %4 = tpu.assume_multiple %3, 8 : i32
    %5 = arith.index_cast %4 : i32 to index
    %c0_5 = arith.constant 0 : index
    %6 = vector.load %arg0[%5, %c0_5] : memref<64x128xf32, #tpu.memory_space<vmem>>, vector<8x128xf32>
    %cst = arith.constant dense<0.000000e+00> : vector<8x128xf32>
    %7 = tpu.matmul %1, %0, %cst {dimension_numbers = #tpu.dot_dimension_numbers<[1], [0], [0], [1], [0, 0, 1, 1], [], []>} : vector<8x32xf32>, vector<32x128xf32>, vector<8x128xf32> -> vector<8x128xf32>
    %8 = arith.addf %6, %7 : vector<8x128xf32>
    %9 = arith.negf %8 : vector<8x128xf32>
    %10 = math.exp %9 : vector<8x128xf32>
    %cst_6 = arith.constant 1.000000e+00 : f32
    %11 = vector.broadcast %cst_6 : f32 to vector<8x128xf32>
    %12 = arith.addf %11, %10 : vector<8x128xf32>
    %13 = arith.divf %11, %12 : vector<8x128xf32>
    %14 = math.tanh %8 : vector<8x128xf32>
    %15 = vector.extract_strided_slice %13 {offsets = [0, 0], sizes = [8, 32], strides = [1, 1]} : vector<8x128xf32> to vector<8x32xf32>
    %16 = vector.extract_strided_slice %13 {offsets = [0, 32], sizes = [8, 32], strides = [1, 1]} : vector<8x128xf32> to vector<8x32xf32>
    %17 = vector.extract_strided_slice %14 {offsets = [0, 64], sizes = [8, 32], strides = [1, 1]} : vector<8x128xf32> to vector<8x32xf32>
    %18 = vector.extract_strided_slice %13 {offsets = [0, 96], sizes = [8, 32], strides = [1, 1]} : vector<8x128xf32> to vector<8x32xf32>
    %19 = arith.mulf %16, %2 : vector<8x32xf32>
    %20 = arith.mulf %15, %17 : vector<8x32xf32>
    %21 = arith.addf %19, %20 : vector<8x32xf32>
    %22 = math.tanh %21 : vector<8x32xf32>
    %23 = arith.mulf %18, %22 : vector<8x32xf32>
    %c1_i32 = arith.constant 1 : i32
    %c8_i32_7 = arith.constant 8 : i32
    %24 = arith.muli %c1_i32, %c8_i32_7 : i32
    %25 = tpu.assume_multiple %24, 8 : i32
    %26 = arith.index_cast %25 : i32 to index
    %c0_8 = arith.constant 0 : index
    %27 = vector.load %arg0[%26, %c0_8] : memref<64x128xf32, #tpu.memory_space<vmem>>, vector<8x128xf32>
    %cst_9 = arith.constant dense<0.000000e+00> : vector<8x128xf32>
    %28 = tpu.matmul %23, %0, %cst_9 {dimension_numbers = #tpu.dot_dimension_numbers<[1], [0], [0], [1], [0, 0, 1, 1], [], []>} : vector<8x32xf32>, vector<32x128xf32>, vector<8x128xf32> -> vector<8x128xf32>
    %29 = arith.addf %27, %28 : vector<8x128xf32>
    %30 = arith.negf %29 : vector<8x128xf32>
    %31 = math.exp %30 : vector<8x128xf32>
    %cst_10 = arith.constant 1.000000e+00 : f32
    %32 = vector.broadcast %cst_10 : f32 to vector<8x128xf32>
    %33 = arith.addf %32, %31 : vector<8x128xf32>
    %34 = arith.divf %32, %33 : vector<8x128xf32>
    %35 = math.tanh %29 : vector<8x128xf32>
    %36 = vector.extract_strided_slice %34 {offsets = [0, 0], sizes = [8, 32], strides = [1, 1]} : vector<8x128xf32> to vector<8x32xf32>
    %37 = vector.extract_strided_slice %34 {offsets = [0, 32], sizes = [8, 32], strides = [1, 1]} : vector<8x128xf32> to vector<8x32xf32>
    %38 = vector.extract_strided_slice %35 {offsets = [0, 64], sizes = [8, 32], strides = [1, 1]} : vector<8x128xf32> to vector<8x32xf32>
    %39 = vector.extract_strided_slice %34 {offsets = [0, 96], sizes = [8, 32], strides = [1, 1]} : vector<8x128xf32> to vector<8x32xf32>
    %40 = arith.mulf %37, %21 : vector<8x32xf32>
    %41 = arith.mulf %36, %38 : vector<8x32xf32>
    %42 = arith.addf %40, %41 : vector<8x32xf32>
    %43 = math.tanh %42 : vector<8x32xf32>
    %44 = arith.mulf %39, %43 : vector<8x32xf32>
    %c2_i32 = arith.constant 2 : i32
    %c8_i32_11 = arith.constant 8 : i32
    %45 = arith.muli %c2_i32, %c8_i32_11 : i32
    %46 = tpu.assume_multiple %45, 8 : i32
    %47 = arith.index_cast %46 : i32 to index
    %c0_12 = arith.constant 0 : index
    %48 = vector.load %arg0[%47, %c0_12] : memref<64x128xf32, #tpu.memory_space<vmem>>, vector<8x128xf32>
    %cst_13 = arith.constant dense<0.000000e+00> : vector<8x128xf32>
    %49 = tpu.matmul %44, %0, %cst_13 {dimension_numbers = #tpu.dot_dimension_numbers<[1], [0], [0], [1], [0, 0, 1, 1], [], []>} : vector<8x32xf32>, vector<32x128xf32>, vector<8x128xf32> -> vector<8x128xf32>
    %50 = arith.addf %48, %49 : vector<8x128xf32>
    %51 = arith.negf %50 : vector<8x128xf32>
    %52 = math.exp %51 : vector<8x128xf32>
    %cst_14 = arith.constant 1.000000e+00 : f32
    %53 = vector.broadcast %cst_14 : f32 to vector<8x128xf32>
    %54 = arith.addf %53, %52 : vector<8x128xf32>
    %55 = arith.divf %53, %54 : vector<8x128xf32>
    %56 = math.tanh %50 : vector<8x128xf32>
    %57 = vector.extract_strided_slice %55 {offsets = [0, 0], sizes = [8, 32], strides = [1, 1]} : vector<8x128xf32> to vector<8x32xf32>
    %58 = vector.extract_strided_slice %55 {offsets = [0, 32], sizes = [8, 32], strides = [1, 1]} : vector<8x128xf32> to vector<8x32xf32>
    %59 = vector.extract_strided_slice %56 {offsets = [0, 64], sizes = [8, 32], strides = [1, 1]} : vector<8x128xf32> to vector<8x32xf32>
    %60 = vector.extract_strided_slice %55 {offsets = [0, 96], sizes = [8, 32], strides = [1, 1]} : vector<8x128xf32> to vector<8x32xf32>
    %61 = arith.mulf %58, %42 : vector<8x32xf32>
    %62 = arith.mulf %57, %59 : vector<8x32xf32>
    %63 = arith.addf %61, %62 : vector<8x32xf32>
    %64 = math.tanh %63 : vector<8x32xf32>
    %65 = arith.mulf %60, %64 : vector<8x32xf32>
    %c3_i32 = arith.constant 3 : i32
    %c8_i32_15 = arith.constant 8 : i32
    %66 = arith.muli %c3_i32, %c8_i32_15 : i32
    %67 = tpu.assume_multiple %66, 8 : i32
    %68 = arith.index_cast %67 : i32 to index
    %c0_16 = arith.constant 0 : index
    %69 = vector.load %arg0[%68, %c0_16] : memref<64x128xf32, #tpu.memory_space<vmem>>, vector<8x128xf32>
    %cst_17 = arith.constant dense<0.000000e+00> : vector<8x128xf32>
    %70 = tpu.matmul %65, %0, %cst_17 {dimension_numbers = #tpu.dot_dimension_numbers<[1], [0], [0], [1], [0, 0, 1, 1], [], []>} : vector<8x32xf32>, vector<32x128xf32>, vector<8x128xf32> -> vector<8x128xf32>
    %71 = arith.addf %69, %70 : vector<8x128xf32>
    %72 = arith.negf %71 : vector<8x128xf32>
    %73 = math.exp %72 : vector<8x128xf32>
    %cst_18 = arith.constant 1.000000e+00 : f32
    %74 = vector.broadcast %cst_18 : f32 to vector<8x128xf32>
    %75 = arith.addf %74, %73 : vector<8x128xf32>
    %76 = arith.divf %74, %75 : vector<8x128xf32>
    %77 = math.tanh %71 : vector<8x128xf32>
    %78 = vector.extract_strided_slice %76 {offsets = [0, 0], sizes = [8, 32], strides = [1, 1]} : vector<8x128xf32> to vector<8x32xf32>
    %79 = vector.extract_strided_slice %76 {offsets = [0, 32], sizes = [8, 32], strides = [1, 1]} : vector<8x128xf32> to vector<8x32xf32>
    %80 = vector.extract_strided_slice %77 {offsets = [0, 64], sizes = [8, 32], strides = [1, 1]} : vector<8x128xf32> to vector<8x32xf32>
    %81 = vector.extract_strided_slice %76 {offsets = [0, 96], sizes = [8, 32], strides = [1, 1]} : vector<8x128xf32> to vector<8x32xf32>
    %82 = arith.mulf %79, %63 : vector<8x32xf32>
    %83 = arith.mulf %78, %80 : vector<8x32xf32>
    %84 = arith.addf %82, %83 : vector<8x32xf32>
    %85 = math.tanh %84 : vector<8x32xf32>
    %86 = arith.mulf %81, %85 : vector<8x32xf32>
    %c4_i32 = arith.constant 4 : i32
    %c8_i32_19 = arith.constant 8 : i32
    %87 = arith.muli %c4_i32, %c8_i32_19 : i32
    %88 = tpu.assume_multiple %87, 8 : i32
    %89 = arith.index_cast %88 : i32 to index
    %c0_20 = arith.constant 0 : index
    %90 = vector.load %arg0[%89, %c0_20] : memref<64x128xf32, #tpu.memory_space<vmem>>, vector<8x128xf32>
    %cst_21 = arith.constant dense<0.000000e+00> : vector<8x128xf32>
    %91 = tpu.matmul %86, %0, %cst_21 {dimension_numbers = #tpu.dot_dimension_numbers<[1], [0], [0], [1], [0, 0, 1, 1], [], []>} : vector<8x32xf32>, vector<32x128xf32>, vector<8x128xf32> -> vector<8x128xf32>
    %92 = arith.addf %90, %91 : vector<8x128xf32>
    %93 = arith.negf %92 : vector<8x128xf32>
    %94 = math.exp %93 : vector<8x128xf32>
    %cst_22 = arith.constant 1.000000e+00 : f32
    %95 = vector.broadcast %cst_22 : f32 to vector<8x128xf32>
    %96 = arith.addf %95, %94 : vector<8x128xf32>
    %97 = arith.divf %95, %96 : vector<8x128xf32>
    %98 = math.tanh %92 : vector<8x128xf32>
    %99 = vector.extract_strided_slice %97 {offsets = [0, 0], sizes = [8, 32], strides = [1, 1]} : vector<8x128xf32> to vector<8x32xf32>
    %100 = vector.extract_strided_slice %97 {offsets = [0, 32], sizes = [8, 32], strides = [1, 1]} : vector<8x128xf32> to vector<8x32xf32>
    %101 = vector.extract_strided_slice %98 {offsets = [0, 64], sizes = [8, 32], strides = [1, 1]} : vector<8x128xf32> to vector<8x32xf32>
    %102 = vector.extract_strided_slice %97 {offsets = [0, 96], sizes = [8, 32], strides = [1, 1]} : vector<8x128xf32> to vector<8x32xf32>
    %103 = arith.mulf %100, %84 : vector<8x32xf32>
    %104 = arith.mulf %99, %101 : vector<8x32xf32>
    %105 = arith.addf %103, %104 : vector<8x32xf32>
    %106 = math.tanh %105 : vector<8x32xf32>
    %107 = arith.mulf %102, %106 : vector<8x32xf32>
    %c5_i32 = arith.constant 5 : i32
    %c8_i32_23 = arith.constant 8 : i32
    %108 = arith.muli %c5_i32, %c8_i32_23 : i32
    %109 = tpu.assume_multiple %108, 8 : i32
    %110 = arith.index_cast %109 : i32 to index
    %c0_24 = arith.constant 0 : index
    %111 = vector.load %arg0[%110, %c0_24] : memref<64x128xf32, #tpu.memory_space<vmem>>, vector<8x128xf32>
    %cst_25 = arith.constant dense<0.000000e+00> : vector<8x128xf32>
    %112 = tpu.matmul %107, %0, %cst_25 {dimension_numbers = #tpu.dot_dimension_numbers<[1], [0], [0], [1], [0, 0, 1, 1], [], []>} : vector<8x32xf32>, vector<32x128xf32>, vector<8x128xf32> -> vector<8x128xf32>
    %113 = arith.addf %111, %112 : vector<8x128xf32>
    %114 = arith.negf %113 : vector<8x128xf32>
    %115 = math.exp %114 : vector<8x128xf32>
    %cst_26 = arith.constant 1.000000e+00 : f32
    %116 = vector.broadcast %cst_26 : f32 to vector<8x128xf32>
    %117 = arith.addf %116, %115 : vector<8x128xf32>
    %118 = arith.divf %116, %117 : vector<8x128xf32>
    %119 = math.tanh %113 : vector<8x128xf32>
    %120 = vector.extract_strided_slice %118 {offsets = [0, 0], sizes = [8, 32], strides = [1, 1]} : vector<8x128xf32> to vector<8x32xf32>
    %121 = vector.extract_strided_slice %118 {offsets = [0, 32], sizes = [8, 32], strides = [1, 1]} : vector<8x128xf32> to vector<8x32xf32>
    %122 = vector.extract_strided_slice %119 {offsets = [0, 64], sizes = [8, 32], strides = [1, 1]} : vector<8x128xf32> to vector<8x32xf32>
    %123 = vector.extract_strided_slice %118 {offsets = [0, 96], sizes = [8, 32], strides = [1, 1]} : vector<8x128xf32> to vector<8x32xf32>
    %124 = arith.mulf %121, %105 : vector<8x32xf32>
    %125 = arith.mulf %120, %122 : vector<8x32xf32>
    %126 = arith.addf %124, %125 : vector<8x32xf32>
    %127 = math.tanh %126 : vector<8x32xf32>
    %128 = arith.mulf %123, %127 : vector<8x32xf32>
    %c6_i32 = arith.constant 6 : i32
    %c8_i32_27 = arith.constant 8 : i32
    %129 = arith.muli %c6_i32, %c8_i32_27 : i32
    %130 = tpu.assume_multiple %129, 8 : i32
    %131 = arith.index_cast %130 : i32 to index
    %c0_28 = arith.constant 0 : index
    %132 = vector.load %arg0[%131, %c0_28] : memref<64x128xf32, #tpu.memory_space<vmem>>, vector<8x128xf32>
    %cst_29 = arith.constant dense<0.000000e+00> : vector<8x128xf32>
    %133 = tpu.matmul %128, %0, %cst_29 {dimension_numbers = #tpu.dot_dimension_numbers<[1], [0], [0], [1], [0, 0, 1, 1], [], []>} : vector<8x32xf32>, vector<32x128xf32>, vector<8x128xf32> -> vector<8x128xf32>
    %134 = arith.addf %132, %133 : vector<8x128xf32>
    %135 = arith.negf %134 : vector<8x128xf32>
    %136 = math.exp %135 : vector<8x128xf32>
    %cst_30 = arith.constant 1.000000e+00 : f32
    %137 = vector.broadcast %cst_30 : f32 to vector<8x128xf32>
    %138 = arith.addf %137, %136 : vector<8x128xf32>
    %139 = arith.divf %137, %138 : vector<8x128xf32>
    %140 = math.tanh %134 : vector<8x128xf32>
    %141 = vector.extract_strided_slice %139 {offsets = [0, 0], sizes = [8, 32], strides = [1, 1]} : vector<8x128xf32> to vector<8x32xf32>
    %142 = vector.extract_strided_slice %139 {offsets = [0, 32], sizes = [8, 32], strides = [1, 1]} : vector<8x128xf32> to vector<8x32xf32>
    %143 = vector.extract_strided_slice %140 {offsets = [0, 64], sizes = [8, 32], strides = [1, 1]} : vector<8x128xf32> to vector<8x32xf32>
    %144 = vector.extract_strided_slice %139 {offsets = [0, 96], sizes = [8, 32], strides = [1, 1]} : vector<8x128xf32> to vector<8x32xf32>
    %145 = arith.mulf %142, %126 : vector<8x32xf32>
    %146 = arith.mulf %141, %143 : vector<8x32xf32>
    %147 = arith.addf %145, %146 : vector<8x32xf32>
    %148 = math.tanh %147 : vector<8x32xf32>
    %149 = arith.mulf %144, %148 : vector<8x32xf32>
    %c7_i32 = arith.constant 7 : i32
    %c8_i32_31 = arith.constant 8 : i32
    %150 = arith.muli %c7_i32, %c8_i32_31 : i32
    %151 = tpu.assume_multiple %150, 8 : i32
    %152 = arith.index_cast %151 : i32 to index
    %c0_32 = arith.constant 0 : index
    %153 = vector.load %arg0[%152, %c0_32] : memref<64x128xf32, #tpu.memory_space<vmem>>, vector<8x128xf32>
    %cst_33 = arith.constant dense<0.000000e+00> : vector<8x128xf32>
    %154 = tpu.matmul %149, %0, %cst_33 {dimension_numbers = #tpu.dot_dimension_numbers<[1], [0], [0], [1], [0, 0, 1, 1], [], []>} : vector<8x32xf32>, vector<32x128xf32>, vector<8x128xf32> -> vector<8x128xf32>
    %155 = arith.addf %153, %154 : vector<8x128xf32>
    %156 = arith.negf %155 : vector<8x128xf32>
    %157 = math.exp %156 : vector<8x128xf32>
    %cst_34 = arith.constant 1.000000e+00 : f32
    %158 = vector.broadcast %cst_34 : f32 to vector<8x128xf32>
    %159 = arith.addf %158, %157 : vector<8x128xf32>
    %160 = arith.divf %158, %159 : vector<8x128xf32>
    %161 = math.tanh %155 : vector<8x128xf32>
    %162 = vector.extract_strided_slice %160 {offsets = [0, 0], sizes = [8, 32], strides = [1, 1]} : vector<8x128xf32> to vector<8x32xf32>
    %163 = vector.extract_strided_slice %160 {offsets = [0, 32], sizes = [8, 32], strides = [1, 1]} : vector<8x128xf32> to vector<8x32xf32>
    %164 = vector.extract_strided_slice %161 {offsets = [0, 64], sizes = [8, 32], strides = [1, 1]} : vector<8x128xf32> to vector<8x32xf32>
    %165 = vector.extract_strided_slice %160 {offsets = [0, 96], sizes = [8, 32], strides = [1, 1]} : vector<8x128xf32> to vector<8x32xf32>
    %166 = arith.mulf %163, %147 : vector<8x32xf32>
    %167 = arith.mulf %162, %164 : vector<8x32xf32>
    %168 = arith.addf %166, %167 : vector<8x32xf32>
    %169 = math.tanh %168 : vector<8x32xf32>
    %170 = arith.mulf %165, %169 : vector<8x32xf32>
    %c8_i32_35 = arith.constant 8 : i32
    %c0_36 = arith.constant 0 : index
    %c0_37 = arith.constant 0 : index
    %171 = vector.load %arg4[%c0_36, %c0_37] : memref<32x128xf32, #tpu.memory_space<vmem>>, vector<32x128xf32>
    %cst_38 = arith.constant dense<0.000000e+00> : vector<8x128xf32>
    %172 = tpu.matmul %170, %171, %cst_38 {dimension_numbers = #tpu.dot_dimension_numbers<[1], [0], [0], [1], [0, 0, 1, 1], [], []>} : vector<8x32xf32>, vector<32x128xf32>, vector<8x128xf32> -> vector<8x128xf32>
    %c0_39 = arith.constant 0 : index
    %c0_40 = arith.constant 0 : index
    %173 = vector.load %arg5[%c0_39, %c0_40] : memref<1x128xf32, #tpu.memory_space<vmem>>, vector<1x128xf32>
    %174 = vector.broadcast %173 : vector<1x128xf32> to vector<8x128xf32>
    %175 = arith.addf %172, %174 : vector<8x128xf32>
    %c0_41 = arith.constant 0 : index
    %c0_42 = arith.constant 0 : index
    %176 = vector.load %arg6[%c0_41, %c0_42] : memref<8x128xf32, #tpu.memory_space<vmem>>, vector<8x128xf32>
    tpu.vector_store %arg6[%c0_41, %c0_42], %175 {strides = array<i32>} : memref<8x128xf32, #tpu.memory_space<vmem>>, vector<8x128xf32>,
    return
  }
}

</mosaic_0001>

<llo_original>
// kernel: forward.1
$region0: #{forward.1}
  #allocation0 [shape = 'u32[]', space=smem, size = 0x4, offset = 0x4, fixed_abs, tag = 'smem constant byte address 0x4 - core index']
  #allocation1 [shape = 'u32[144,128]{1,0:T(1,128)}', space=vmem, size = 0x12000, scoped, tag = 'internal scratch']
  %s0 = inlined_call_operand.vmem [shape: f32[64,128], index: 0, kind: input, shape index: {}]
  %s1 = inlined_call_operand.vmem [shape: f32[32,128], index: 1, kind: input, shape index: {}]
  %s2 = inlined_call_operand.vmem [shape: f32[8,32], index: 2, kind: input, shape index: {}]
  %s3 = inlined_call_operand.vmem [shape: f32[8,32], index: 3, kind: input, shape index: {}]
  %s4 = inlined_call_operand.vmem [shape: f32[32,128], index: 4, kind: input, shape index: {}]
  %s5 = inlined_call_operand.vmem [shape: f32[1,128], index: 5, kind: input, shape index: {}]
  %s6 = inlined_call_operand.vmem [shape: f32[8,128], index: 6, kind: output, shape index: {}]
  %s7 = sld [smem:[#allocation0]]
  $region34: #{forward.1} parent=0
    _
  %s9 = ssub.s32 1, %s7
  %s10 = scalar_select 0, %s9, %s7
  // Predicated region
  $region2: #{forward.1} parent=0 // pred_check
    _
  $region3: #{forward.1} parent=0 // pred_check_branch
    %12 = sbr.rel (0) target = $region5
  $region4: #{forward.1} parent=0 // pred_region
    _
  $region5: #{forward.1} parent=0 // pred_fallthru
    _
  // Predicated region
  $region6: #{forward.1} parent=0 // pred_check
    _
  $region7: #{forward.1} parent=0 // pred_check_branch
    %14 = sbr.rel (0) target = $region9
  $region8: #{forward.1} parent=0 // pred_region
    _
  $region9: #{forward.1} parent=0 // pred_fallthru
    _
  // Predicated region
  $region10: #{forward.1} parent=0 // pred_check
    _
  $region11: #{forward.1} parent=0 // pred_check_branch
    %16 = sbr.rel (0) target = $region13
  $region12: #{forward.1} parent=0 // pred_region
    _
  $region13: #{forward.1} parent=0 // pred_fallthru
    _
  // Predicated region
  $region14: #{forward.1} parent=0 // pred_check
    _
  $region15: #{forward.1} parent=0 // pred_check_branch
    %18 = sbr.rel (0) target = $region17
  $region16: #{forward.1} parent=0 // pred_region
    _
  $region17: #{forward.1} parent=0 // pred_fallthru
    _
  // Predicated region
  $region18: #{forward.1} parent=0 // pred_check
    _
  $region19: #{forward.1} parent=0 // pred_check_branch
    %20 = sbr.rel (0) target = $region21
  $region20: #{forward.1} parent=0 // pred_region
    _
  $region21: #{forward.1} parent=0 // pred_fallthru
    _
  // Predicated region
  $region22: #{forward.1} parent=0 // pred_check
    _
  $region23: #{forward.1} parent=0 // pred_check_branch
    %22 = sbr.rel (0) target = $region25
  $region24: #{forward.1} parent=0 // pred_region
    _
  $region25: #{forward.1} parent=0 // pred_fallthru
    _
  %v23 = vld [vmem:[%s1] sm:$0xff]
  %v24 = vld [vmem:[%s1 + $0x8] sm:$0xff]
  %v25 = vld [vmem:[%s1 + $0x10] sm:$0xff]
  %v26 = vld [vmem:[%s1 + $0x18] sm:$0xff]
  %v27 = vld [vmem:[%s2] sm:$0xff]
  %v28 = vld [vmem:[%s3] sm:$0xff]
  %v29 = vld [vmem:[%s0] sm:$0xff]
  %vm30 = vcmask 261120
  %v32 = vsel %vm30, %v27, 0
  %34 = vmatprep.subr.mxu0 0.0
  %35 = vmatpush1.msra.mxu0 0.0
  %36 = vmatprep.subr.mxu0 0.0
  %37 = vmatpush1.msra.mxu0 0.0
  %38 = vmatprep.subr.mxu0 0.0
  %39 = vmatpush1.msra.mxu0 0.0
  %40 = vmatprep.subr.mxu0 0.0
  %41 = vmatpush1.msra.mxu0 0.0
  %42 = vmatprep.subr.mxu0 0.0
  %43 = vmatpush1.msra.mxu0 0.0
  %44 = vmatprep.subr.mxu0 0.0
  %45 = vmatpush1.msra.mxu0 0.0
  %46 = vmatprep.subr.mxu0 0.0
  %47 = vmatpush1.msra.mxu0 0.0
  %48 = vmatprep.subr.mxu0 0.0
  %49 = vmatpush1.msra.mxu0 0.0
  %50 = vmatprep.subr.mxu0 0.0
  %51 = vmatpush1.msra.mxu0 0.0
  %52 = vmatprep.subr.mxu0 0.0
  %53 = vmatpush1.msra.mxu0 0.0
  %54 = vmatprep.subr.mxu0 0.0
  %55 = vmatpush1.msra.mxu0 0.0
  %56 = vmatprep.subr.mxu0 0.0
  %57 = vmatpush1.msra.mxu0 0.0
  %58 = vmatprep.subr.mxu0 0.0
  %59 = vmatpush1.msra.mxu0 %v26
  %60 = vmatprep.subr.mxu0 0.0
  %61 = vmatpush1.msra.mxu0 %v25
  %62 = vmatprep.subr.mxu0 0.0
  %63 = vmatpush1.msra.mxu0 %v24
  %64 = vmatprep.subr.mxu0 0.0
  %65 = vmatpush1.msra.mxu0 %v23
  %66 = vmatprep.subr.mxu0 0.0
  %67 = vmatpush2.msra.mxu0 0.0
  %68 = vmatprep.subr.mxu0 0.0
  %69 = vmatpush2.msra.mxu0 0.0
  %70 = vmatprep.subr.mxu0 0.0
  %71 = vmatpush2.msra.mxu0 0.0
  %72 = vmatprep.subr.mxu0 0.0
  %73 = vmatpush2.msra.mxu0 0.0
  %74 = vmatprep.subr.mxu0 0.0
  %75 = vmatpush2.msra.mxu0 0.0
  %76 = vmatprep.subr.mxu0 0.0
  %77 = vmatpush2.msra.mxu0 0.0
  %78 = vmatprep.subr.mxu0 0.0
  %79 = vmatpush2.msra.mxu0 0.0
  %80 = vmatprep.subr.mxu0 0.0
  %81 = vmatpush2.msra.mxu0 0.0
  %82 = vmatprep.subr.mxu0 0.0
  %83 = vmatpush2.msra.mxu0 0.0
  %84 = vmatprep.subr.mxu0 0.0
  %85 = vmatpush2.msra.mxu0 0.0
  %86 = vmatprep.subr.mxu0 0.0
  %87 = vmatpush2.msra.mxu0 0.0
  %88 = vmatprep.subr.mxu0 0.0
  %89 = vmatpush2.msra.mxu0 0.0
  %90 = vmatprep.subr.mxu0 0.0
  %91 = vmatpush2.msra.mxu0 0.0
  %92 = vmatprep.subr.mxu0 0.0
  %93 = vmatpush2.msra.mxu0 0.0
  %94 = vmatprep.subr.mxu0 0.0
  %95 = vmatpush2.msra.mxu0 0.0
  %96 = vmatprep.subr.mxu0 0.0
  %97 = vmatpush2.msra.mxu0 0.0
  %98 = vmatprep.mubr.f32.mxu0 0.0
  %99 = vmatmul.mubr.f32.gmra.mxu0 %v32
  %v100 = vpop.f32.mrf.mxu0
  %v101 = vadd.f32 0.0, %v100
  %v102 = vpop.f32.mrf.mxu0
  %103 = vdwg.mxu0
  %v104 = vadd.f32 %v29, %v101
  %v105 = vxor.u32 %v104, 2147483648
  %v106 = vmul.f32 %v105, 1.442695
  %v107 = vpow.pop %v106
  %v108 = vadd.f32 %v107, 1.0
  %v109 = vrcp.pop %v108
  %v110 = vmul.f32 1.0, %v109
  %v111 = vtanh.pop %v104
  %113 = vrot.lane.b32.xlu0 %v28, 32
  %v114 = vpop.permute.xlu0 %113
  %v116 = vmul.f32 %v110, %v114
  %118 = vrot.lane.b32.xlu0 %v111, 64
  %v119 = vpop.permute.xlu0 %118
  %v121 = vmul.f32 %v110, %v119
  %123 = vrot.lane.b32.xlu0 %v121, 32
  %v124 = vpop.permute.xlu0 %123
  %v126 = vadd.f32 %v116, %v124
  %v127 = vtanh.pop %v126
  %129 = vrot.lane.b32.xlu0 %v127, 64
  %v130 = vpop.permute.xlu0 %129
  %v132 = vmul.f32 %v110, %v130
  %s133 = scalar_lea.vmem %s0, 8
  %v134 = vld [vmem:[%s133] sm:$0xff]
  %136 = vrot.lane.b32.xlu0 %v132, 32
  %v137 = vpop.permute.xlu0 %136
  %v138 = vsel %vm30, %v137, 0
  %140 = vmatprep.subr.mxu0 0.0
  %141 = vmatpush1.msra.mxu0 0.0
  %142 = vmatprep.subr.mxu0 0.0
  %143 = vmatpush1.msra.mxu0 0.0
  %144 = vmatprep.subr.mxu0 0.0
  %145 = vmatpush1.msra.mxu0 0.0
  %146 = vmatprep.subr.mxu0 0.0
  %147 = vmatpush1.msra.mxu0 0.0
  %148 = vmatprep.subr.mxu0 0.0
  %149 = vmatpush1.msra.mxu0 0.0
  %150 = vmatprep.subr.mxu0 0.0
  %151 = vmatpush1.msra.mxu0 0.0
  %152 = vmatprep.subr.mxu0 0.0
  %153 = vmatpush1.msra.mxu0 0.0
  %154 = vmatprep.subr.mxu0 0.0
  %155 = vmatpush1.msra.mxu0 0.0
  %156 = vmatprep.subr.mxu0 0.0
  %157 = vmatpush1.msra.mxu0 0.0
  %158 = vmatprep.subr.mxu0 0.0
  %159 = vmatpush1.msra.mxu0 0.0
  %160 = vmatprep.subr.mxu0 0.0
  %161 = vmatpush1.msra.mxu0 0.0
  %162 = vmatprep.subr.mxu0 0.0
  %163 = vmatpush1.msra.mxu0 0.0
  %164 = vmatprep.subr.mxu0 0.0
  %165 = vmatpush1.msra.mxu0 %v26
  %166 = vmatprep.subr.mxu0 0.0
  %167 = vmatpush1.msra.mxu0 %v25
  %168 = vmatprep.subr.mxu0 0.0
  %169 = vmatpush1.msra.mxu0 %v24
  %170 = vmatprep.subr.mxu0 0.0
  %171 = vmatpush1.msra.mxu0 %v23
  %172 = vmatprep.subr.mxu0 0.0
  %173 = vmatpush2.msra.mxu0 0.0
  %174 = vmatprep.subr.mxu0 0.0
  %175 = vmatpush2.msra.mxu0 0.0
  %176 = vmatprep.subr.mxu0 0.0
  %177 = vmatpush2.msra.mxu0 0.0
  %178 = vmatprep.subr.mxu0 0.0
  %179 = vmatpush2.msra.mxu0 0.0
  %180 = vmatprep.subr.mxu0 0.0
  %181 = vmatpush2.msra.mxu0 0.0
  %182 = vmatprep.subr.mxu0 0.0
  %183 = vmatpush2.msra.mxu0 0.0
  %184 = vmatprep.subr.mxu0 0.0
  %185 = vmatpush2.msra.mxu0 0.0
  %186 = vmatprep.subr.mxu0 0.0
  %187 = vmatpush2.msra.mxu0 0.0
  %188 = vmatprep.subr.mxu0 0.0
  %189 = vmatpush2.msra.mxu0 0.0
  %190 = vmatprep.subr.mxu0 0.0
  %191 = vmatpush2.msra.mxu0 0.0
  %192 = vmatprep.subr.mxu0 0.0
  %193 = vmatpush2.msra.mxu0 0.0
  %194 = vmatprep.subr.mxu0 0.0
  %195 = vmatpush2.msra.mxu0 0.0
  %196 = vmatprep.subr.mxu0 0.0
  %197 = vmatpush2.msra.mxu0 0.0
  %198 = vmatprep.subr.mxu0 0.0
  %199 = vmatpush2.msra.mxu0 0.0
  %200 = vmatprep.subr.mxu0 0.0
  %201 = vmatpush2.msra.mxu0 0.0
  %202 = vmatprep.subr.mxu0 0.0
  %203 = vmatpush2.msra.mxu0 0.0
  %204 = vmatprep.mubr.f32.mxu0 0.0
  %205 = vmatmul.mubr.f32.gmra.mxu0 %v138
  %v206 = vpop.f32.mrf.mxu0
  %v207 = vadd.f32 0.0, %v206
  %v208 = vpop.f32.mrf.mxu0
  %209 = vdwg.mxu0
  %v210 = vadd.f32 %v134, %v207
  %v211 = vxor.u32 %v210, 2147483648
  %v212 = vmul.f32 %v211, 1.442695
  %v213 = vpow.pop %v212
  %v214 = vadd.f32 %v213, 1.0
  %v215 = vrcp.pop %v214
  %v216 = vmul.f32 1.0, %v215
  %v217 = vtanh.pop %v210
  %v218 = vmul.f32 %v216, %v126
  %220 = vrot.lane.b32.xlu0 %v217, 64
  %v221 = vpop.permute.xlu0 %220
  %v223 = vmul.f32 %v216, %v221
  %225 = vrot.lane.b32.xlu0 %v223, 32
  %v226 = vpop.permute.xlu0 %225
  %v228 = vadd.f32 %v218, %v226
  %v229 = vtanh.pop %v228
  %231 = vrot.lane.b32.xlu0 %v229, 64
  %v232 = vpop.permute.xlu0 %231
  %v234 = vmul.f32 %v216, %v232
  %s235 = scalar_lea.vmem %s0, 16
  %v236 = vld [vmem:[%s235] sm:$0xff]
  %238 = vrot.lane.b32.xlu0 %v234, 32
  %v239 = vpop.permute.xlu0 %238
  %v240 = vsel %vm30, %v239, 0
  %242 = vmatprep.subr.mxu0 0.0
  %243 = vmatpush1.msra.mxu0 0.0
  %244 = vmatprep.subr.mxu0 0.0
  %245 = vmatpush1.msra.mxu0 0.0
  %246 = vmatprep.subr.mxu0 0.0
  %247 = vmatpush1.msra.mxu0 0.0
  %248 = vmatprep.subr.mxu0 0.0
  %249 = vmatpush1.msra.mxu0 0.0
  %250 = vmatprep.subr.mxu0 0.0
  %251 = vmatpush1.msra.mxu0 0.0
  %252 = vmatprep.subr.mxu0 0.0
  %253 = vmatpush1.msra.mxu0 0.0
  %254 = vmatprep.subr.mxu0 0.0
  %255 = vmatpush1.msra.mxu0 0.0
  %256 = vmatprep.subr.mxu0 0.0
  %257 = vmatpush1.msra.mxu0 0.0
  %258 = vmatprep.subr.mxu0 0.0
  %259 = vmatpush1.msra.mxu0 0.0
  %260 = vmatprep.subr.mxu0 0.0
  %261 = vmatpush1.msra.mxu0 0.0
  %262 = vmatprep.subr.mxu0 0.0
  %263 = vmatpush1.msra.mxu0 0.0
  %264 = vmatprep.subr.mxu0 0.0
  %265 = vmatpush1.msra.mxu0 0.0
  %266 = vmatprep.subr.mxu0 0.0
  %267 = vmatpush1.msra.mxu0 %v26
  %268 = vmatprep.subr.mxu0 0.0
  %269 = vmatpush1.msra.mxu0 %v25
  %270 = vmatprep.subr.mxu0 0.0
  %271 = vmatpush1.msra.mxu0 %v24
  %272 = vmatprep.subr.mxu0 0.0
  %273 = vmatpush1.msra.mxu0 %v23
  %274 = vmatprep.subr.mxu0 0.0
  %275 = vmatpush2.msra.mxu0 0.0
  %276 = vmatprep.subr.mxu0 0.0
  %277 = vmatpush2.msra.mxu0 0.0
  %278 = vmatprep.subr.mxu0 0.0
  %279 = vmatpush2.msra.mxu0 0.0
  %280 = vmatprep.subr.mxu0 0.0
  %281 = vmatpush2.msra.mxu0 0.0
  %282 = vmatprep.subr.mxu0 0.0
  %283 = vmatpush2.msra.mxu0 0.0
  %284 = vmatprep.subr.mxu0 0.0
  %285 = vmatpush2.msra.mxu0 0.0
  %286 = vmatprep.subr.mxu0 0.0
  %287 = vmatpush2.msra.mxu0 0.0
  %288 = vmatprep.subr.mxu0 0.0
  %289 = vmatpush2.msra.mxu0 0.0
  %290 = vmatprep.subr.mxu0 0.0
  %291 = vmatpush2.msra.mxu0 0.0
  %292 = vmatprep.subr.mxu0 0.0
  %293 = vmatpush2.msra.mxu0 0.0
  %294 = vmatprep.subr.mxu0 0.0
  %295 = vmatpush2.msra.mxu0 0.0
  %296 = vmatprep.subr.mxu0 0.0
  %297 = vmatpush2.msra.mxu0 0.0
  %298 = vmatprep.subr.mxu0 0.0
  %299 = vmatpush2.msra.mxu0 0.0
  %300 = vmatprep.subr.mxu0 0.0
  %301 = vmatpush2.msra.mxu0 0.0
  %302 = vmatprep.subr.mxu0 0.0
  %303 = vmatpush2.msra.mxu0 0.0
  %304 = vmatprep.subr.mxu0 0.0
  %305 = vmatpush2.msra.mxu0 0.0
  %306 = vmatprep.mubr.f32.mxu0 0.0
  %307 = vmatmul.mubr.f32.gmra.mxu0 %v240
  %v308 = vpop.f32.mrf.mxu0
  %v309 = vadd.f32 0.0, %v308
  %v310 = vpop.f32.mrf.mxu0
  %311 = vdwg.mxu0
  %v312 = vadd.f32 %v236, %v309
  %v313 = vxor.u32 %v312, 2147483648
  %v314 = vmul.f32 %v313, 1.442695
  %v315 = vpow.pop %v314
  %v316 = vadd.f32 %v315, 1.0
  %v317 = vrcp.pop %v316
  %v318 = vmul.f32 1.0, %v317
  %v319 = vtanh.pop %v312
  %v320 = vmul.f32 %v318, %v228
  %322 = vrot.lane.b32.xlu0 %v319, 64
  %v323 = vpop.permute.xlu0 %322
  %v325 = vmul.f32 %v318, %v323
  %327 = vrot.lane.b32.xlu0 %v325, 32
  %v328 = vpop.permute.xlu0 %327
  %v330 = vadd.f32 %v320, %v328
  %v331 = vtanh.pop %v330
  %333 = vrot.lane.b32.xlu0 %v331, 64
  %v334 = vpop.permute.xlu0 %333
  %v336 = vmul.f32 %v318, %v334
  %s337 = scalar_lea.vmem %s0, 24
  %v338 = vld [vmem:[%s337] sm:$0xff]
  %340 = vrot.lane.b32.xlu0 %v336, 32
  %v341 = vpop.permute.xlu0 %340
  %v342 = vsel %vm30, %v341, 0
  %344 = vmatprep.subr.mxu0 0.0
  %345 = vmatpush1.msra.mxu0 0.0
  %346 = vmatprep.subr.mxu0 0.0
  %347 = vmatpush1.msra.mxu0 0.0
  %348 = vmatprep.subr.mxu0 0.0
  %349 = vmatpush1.msra.mxu0 0.0
  %350 = vmatprep.subr.mxu0 0.0
  %351 = vmatpush1.msra.mxu0 0.0
  %352 = vmatprep.subr.mxu0 0.0
  %353 = vmatpush1.msra.mxu0 0.0
  %354 = vmatprep.subr.mxu0 0.0
  %355 = vmatpush1.msra.mxu0 0.0
  %356 = vmatprep.subr.mxu0 0.0
  %357 = vmatpush1.msra.mxu0 0.0
  %358 = vmatprep.subr.mxu0 0.0
  %359 = vmatpush1.msra.mxu0 0.0
  %360 = vmatprep.subr.mxu0 0.0
  %361 = vmatpush1.msra.mxu0 0.0
  %362 = vmatprep.subr.mxu0 0.0
  %363 = vmatpush1.msra.mxu0 0.0
  %364 = vmatprep.subr.mxu0 0.0
  %365 = vmatpush1.msra.mxu0 0.0
  %366 = vmatprep.subr.mxu0 0.0
  %367 = vmatpush1.msra.mxu0 0.0
  %368 = vmatprep.subr.mxu0 0.0
  %369 = vmatpush1.msra.mxu0 %v26
  %370 = vmatprep.subr.mxu0 0.0
  %371 = vmatpush1.msra.mxu0 %v25
  %372 = vmatprep.subr.mxu0 0.0
  %373 = vmatpush1.msra.mxu0 %v24
  %374 = vmatprep.subr.mxu0 0.0
  %375 = vmatpush1.msra.mxu0 %v23
  %376 = vmatprep.subr.mxu0 0.0
  %377 = vmatpush2.msra.mxu0 0.0
  %378 = vmatprep.subr.mxu0 0.0
  %379 = vmatpush2.msra.mxu0 0.0
  %380 = vmatprep.subr.mxu0 0.0
  %381 = vmatpush2.msra.mxu0 0.0
  %382 = vmatprep.subr.mxu0 0.0
  %383 = vmatpush2.msra.mxu0 0.0
  %384 = vmatprep.subr.mxu0 0.0
  %385 = vmatpush2.msra.mxu0 0.0
  %386 = vmatprep.subr.mxu0 0.0
  %387 = vmatpush2.msra.mxu0 0.0
  %388 = vmatprep.subr.mxu0 0.0
  %389 = vmatpush2.msra.mxu0 0.0
  %390 = vmatprep.subr.mxu0 0.0
  %391 = vmatpush2.msra.mxu0 0.0
  %392 = vmatprep.subr.mxu0 0.0
  %393 = vmatpush2.msra.mxu0 0.0
  %394 = vmatprep.subr.mxu0 0.0
  %395 = vmatpush2.msra.mxu0 0.0
  %396 = vmatprep.subr.mxu0 0.0
  %397 = vmatpush2.msra.mxu0 0.0
  %398 = vmatprep.subr.mxu0 0.0
  %399 = vmatpush2.msra.mxu0 0.0
  %400 = vmatprep.subr.mxu0 0.0
  %401 = vmatpush2.msra.mxu0 0.0
  %402 = vmatprep.subr.mxu0 0.0
  %403 = vmatpush2.msra.mxu0 0.0
  %404 = vmatprep.subr.mxu0 0.0
  %405 = vmatpush2.msra.mxu0 0.0
  %406 = vmatprep.subr.mxu0 0.0
  %407 = vmatpush2.msra.mxu0 0.0
  %408 = vmatprep.mubr.f32.mxu0 0.0
  %409 = vmatmul.mubr.f32.gmra.mxu0 %v342
  %v410 = vpop.f32.mrf.mxu0
  %v411 = vadd.f32 0.0, %v410
  %v412 = vpop.f32.mrf.mxu0
  %413 = vdwg.mxu0
  %v414 = vadd.f32 %v338, %v411
  %v415 = vxor.u32 %v414, 2147483648
  %v416 = vmul.f32 %v415, 1.442695
  %v417 = vpow.pop %v416
  %v418 = vadd.f32 %v417, 1.0
  %v419 = vrcp.pop %v418
  %v420 = vmul.f32 1.0, %v419
  %v421 = vtanh.pop %v414
  %v422 = vmul.f32 %v420, %v330
  %424 = vrot.lane.b32.xlu0 %v421, 64
  %v425 = vpop.permute.xlu0 %424
  %v427 = vmul.f32 %v420, %v425
  %429 = vrot.lane.b32.xlu0 %v427, 32
  %v430 = vpop.permute.xlu0 %429
  %v432 = vadd.f32 %v422, %v430
  %v433 = vtanh.pop %v432
  %435 = vrot.lane.b32.xlu0 %v433, 64
  %v436 = vpop.permute.xlu0 %435
  %v438 = vmul.f32 %v420, %v436
  %s439 = scalar_lea.vmem %s0, 32
  %v440 = vld [vmem:[%s439] sm:$0xff]
  %442 = vrot.lane.b32.xlu0 %v438, 32
  %v443 = vpop.permute.xlu0 %442
  %v444 = vsel %vm30, %v443, 0
  %446 = vmatprep.subr.mxu0 0.0
  %447 = vmatpush1.msra.mxu0 0.0
  %448 = vmatprep.subr.mxu0 0.0
  %449 = vmatpush1.msra.mxu0 0.0
  %450 = vmatprep.subr.mxu0 0.0
  %451 = vmatpush1.msra.mxu0 0.0
  %452 = vmatprep.subr.mxu0 0.0
  %453 = vmatpush1.msra.mxu0 0.0
  %454 = vmatprep.subr.mxu0 0.0
  %455 = vmatpush1.msra.mxu0 0.0
  %456 = vmatprep.subr.mxu0 0.0
  %457 = vmatpush1.msra.mxu0 0.0
  %458 = vmatprep.subr.mxu0 0.0
  %459 = vmatpush1.msra.mxu0 0.0
  %460 = vmatprep.subr.mxu0 0.0
  %461 = vmatpush1.msra.mxu0 0.0
  %462 = vmatprep.subr.mxu0 0.0
  %463 = vmatpush1.msra.mxu0 0.0
  %464 = vmatprep.subr.mxu0 0.0
  %465 = vmatpush1.msra.mxu0 0.0
  %466 = vmatprep.subr.mxu0 0.0
  %467 = vmatpush1.msra.mxu0 0.0
  %468 = vmatprep.subr.mxu0 0.0
  %469 = vmatpush1.msra.mxu0 0.0
  %470 = vmatprep.subr.mxu0 0.0
  %471 = vmatpush1.msra.mxu0 %v26
  %472 = vmatprep.subr.mxu0 0.0
  %473 = vmatpush1.msra.mxu0 %v25
  %474 = vmatprep.subr.mxu0 0.0
  %475 = vmatpush1.msra.mxu0 %v24
  %476 = vmatprep.subr.mxu0 0.0
  %477 = vmatpush1.msra.mxu0 %v23
  %478 = vmatprep.subr.mxu0 0.0
  %479 = vmatpush2.msra.mxu0 0.0
  %480 = vmatprep.subr.mxu0 0.0
  %481 = vmatpush2.msra.mxu0 0.0
  %482 = vmatprep.subr.mxu0 0.0
  %483 = vmatpush2.msra.mxu0 0.0
  %484 = vmatprep.subr.mxu0 0.0
  %485 = vmatpush2.msra.mxu0 0.0
  %486 = vmatprep.subr.mxu0 0.0
  %487 = vmatpush2.msra.mxu0 0.0
  %488 = vmatprep.subr.mxu0 0.0
  %489 = vmatpush2.msra.mxu0 0.0
  %490 = vmatprep.subr.mxu0 0.0
  %491 = vmatpush2.msra.mxu0 0.0
  %492 = vmatprep.subr.mxu0 0.0
  %493 = vmatpush2.msra.mxu0 0.0
  %494 = vmatprep.subr.mxu0 0.0
  %495 = vmatpush2.msra.mxu0 0.0
  %496 = vmatprep.subr.mxu0 0.0
  %497 = vmatpush2.msra.mxu0 0.0
  %498 = vmatprep.subr.mxu0 0.0
  %499 = vmatpush2.msra.mxu0 0.0
  %500 = vmatprep.subr.mxu0 0.0
  %501 = vmatpush2.msra.mxu0 0.0
  %502 = vmatprep.subr.mxu0 0.0
  %503 = vmatpush2.msra.mxu0 0.0
  %504 = vmatprep.subr.mxu0 0.0
  %505 = vmatpush2.msra.mxu0 0.0
  %506 = vmatprep.subr.mxu0 0.0
  %507 = vmatpush2.msra.mxu0 0.0
  %508 = vmatprep.subr.mxu0 0.0
  %509 = vmatpush2.msra.mxu0 0.0
  %510 = vmatprep.mubr.f32.mxu0 0.0
  %511 = vmatmul.mubr.f32.gmra.mxu0 %v444
  %v512 = vpop.f32.mrf.mxu0
  %v513 = vadd.f32 0.0, %v512
  %v514 = vpop.f32.mrf.mxu0
  %515 = vdwg.mxu0
  %v516 = vadd.f32 %v440, %v513
  %v517 = vxor.u32 %v516, 2147483648
  %v518 = vmul.f32 %v517, 1.442695
  %v519 = vpow.pop %v518
  %v520 = vadd.f32 %v519, 1.0
  %v521 = vrcp.pop %v520
  %v522 = vmul.f32 1.0, %v521
  %v523 = vtanh.pop %v516
  %v524 = vmul.f32 %v522, %v432
  %526 = vrot.lane.b32.xlu0 %v523, 64
  %v527 = vpop.permute.xlu0 %526
  %v529 = vmul.f32 %v522, %v527
  %531 = vrot.lane.b32.xlu0 %v529, 32
  %v532 = vpop.permute.xlu0 %531
  %v534 = vadd.f32 %v524, %v532
  %v535 = vtanh.pop %v534
  %537 = vrot.lane.b32.xlu0 %v535, 64
  %v538 = vpop.permute.xlu0 %537
  %v540 = vmul.f32 %v522, %v538
  %s541 = scalar_lea.vmem %s0, 40
  %v542 = vld [vmem:[%s541] sm:$0xff]
  %544 = vrot.lane.b32.xlu0 %v540, 32
  %v545 = vpop.permute.xlu0 %544
  %v546 = vsel %vm30, %v545, 0
  %548 = vmatprep.subr.mxu0 0.0
  %549 = vmatpush1.msra.mxu0 0.0
  %550 = vmatprep.subr.mxu0 0.0
  %551 = vmatpush1.msra.mxu0 0.0
  %552 = vmatprep.subr.mxu0 0.0
  %553 = vmatpush1.msra.mxu0 0.0
  %554 = vmatprep.subr.mxu0 0.0
  %555 = vmatpush1.msra.mxu0 0.0
  %556 = vmatprep.subr.mxu0 0.0
  %557 = vmatpush1.msra.mxu0 0.0
  %558 = vmatprep.subr.mxu0 0.0
  %559 = vmatpush1.msra.mxu0 0.0
  %560 = vmatprep.subr.mxu0 0.0
  %561 = vmatpush1.msra.mxu0 0.0
  %562 = vmatprep.subr.mxu0 0.0
  %563 = vmatpush1.msra.mxu0 0.0
  %564 = vmatprep.subr.mxu0 0.0
  %565 = vmatpush1.msra.mxu0 0.0
  %566 = vmatprep.subr.mxu0 0.0
  %567 = vmatpush1.msra.mxu0 0.0
  %568 = vmatprep.subr.mxu0 0.0
  %569 = vmatpush1.msra.mxu0 0.0
  %570 = vmatprep.subr.mxu0 0.0
  %571 = vmatpush1.msra.mxu0 0.0
  %572 = vmatprep.subr.mxu0 0.0
  %573 = vmatpush1.msra.mxu0 %v26
  %574 = vmatprep.subr.mxu0 0.0
  %575 = vmatpush1.msra.mxu0 %v25
  %576 = vmatprep.subr.mxu0 0.0
  %577 = vmatpush1.msra.mxu0 %v24
  %578 = vmatprep.subr.mxu0 0.0
  %579 = vmatpush1.msra.mxu0 %v23
  %580 = vmatprep.subr.mxu0 0.0
  %581 = vmatpush2.msra.mxu0 0.0
  %582 = vmatprep.subr.mxu0 0.0
  %583 = vmatpush2.msra.mxu0 0.0
  %584 = vmatprep.subr.mxu0 0.0
  %585 = vmatpush2.msra.mxu0 0.0
  %586 = vmatprep.subr.mxu0 0.0
  %587 = vmatpush2.msra.mxu0 0.0
  %588 = vmatprep.subr.mxu0 0.0
  %589 = vmatpush2.msra.mxu0 0.0
  %590 = vmatprep.subr.mxu0 0.0
  %591 = vmatpush2.msra.mxu0 0.0
  %592 = vmatprep.subr.mxu0 0.0
  %593 = vmatpush2.msra.mxu0 0.0
  %594 = vmatprep.subr.mxu0 0.0
  %595 = vmatpush2.msra.mxu0 0.0
  %596 = vmatprep.subr.mxu0 0.0
  %597 = vmatpush2.msra.mxu0 0.0
  %598 = vmatprep.subr.mxu0 0.0
  %599 = vmatpush2.msra.mxu0 0.0
  %600 = vmatprep.subr.mxu0 0.0
  %601 = vmatpush2.msra.mxu0 0.0
  %602 = vmatprep.subr.mxu0 0.0
  %603 = vmatpush2.msra.mxu0 0.0
  %604 = vmatprep.subr.mxu0 0.0
  %605 = vmatpush2.msra.mxu0 0.0
  %606 = vmatprep.subr.mxu0 0.0
  %607 = vmatpush2.msra.mxu0 0.0
  %608 = vmatprep.subr.mxu0 0.0
  %609 = vmatpush2.msra.mxu0 0.0
  %610 = vmatprep.subr.mxu0 0.0
  %611 = vmatpush2.msra.mxu0 0.0
  %612 = vmatprep.mubr.f32.mxu0 0.0
  %613 = vmatmul.mubr.f32.gmra.mxu0 %v546
  %v614 = vpop.f32.mrf.mxu0
  %v615 = vadd.f32 0.0, %v614
  %v616 = vpop.f32.mrf.mxu0
  %617 = vdwg.mxu0
  %v618 = vadd.f32 %v542, %v615
  %v619 = vxor.u32 %v618, 2147483648
  %v620 = vmul.f32 %v619, 1.442695
  %v621 = vpow.pop %v620
  %v622 = vadd.f32 %v621, 1.0
  %v623 = vrcp.pop %v622
  %v624 = vmul.f32 1.0, %v623
  %v625 = vtanh.pop %v618
  %v626 = vmul.f32 %v624, %v534
  %628 = vrot.lane.b32.xlu0 %v625, 64
  %v629 = vpop.permute.xlu0 %628
  %v631 = vmul.f32 %v624, %v629
  %633 = vrot.lane.b32.xlu0 %v631, 32
  %v634 = vpop.permute.xlu0 %633
  %v636 = vadd.f32 %v626, %v634
  %v637 = vtanh.pop %v636
  %639 = vrot.lane.b32.xlu0 %v637, 64
  %v640 = vpop.permute.xlu0 %639
  %v642 = vmul.f32 %v624, %v640
  %s643 = scalar_lea.vmem %s0, 48
  %v644 = vld [vmem:[%s643] sm:$0xff]
  %646 = vrot.lane.b32.xlu0 %v642, 32
  %v647 = vpop.permute.xlu0 %646
  %v648 = vsel %vm30, %v647, 0
  %650 = vmatprep.subr.mxu0 0.0
  %651 = vmatpush1.msra.mxu0 0.0
  %652 = vmatprep.subr.mxu0 0.0
  %653 = vmatpush1.msra.mxu0 0.0
  %654 = vmatprep.subr.mxu0 0.0
  %655 = vmatpush1.msra.mxu0 0.0
  %656 = vmatprep.subr.mxu0 0.0
  %657 = vmatpush1.msra.mxu0 0.0
  %658 = vmatprep.subr.mxu0 0.0
  %659 = vmatpush1.msra.mxu0 0.0
  %660 = vmatprep.subr.mxu0 0.0
  %661 = vmatpush1.msra.mxu0 0.0
  %662 = vmatprep.subr.mxu0 0.0
  %663 = vmatpush1.msra.mxu0 0.0
  %664 = vmatprep.subr.mxu0 0.0
  %665 = vmatpush1.msra.mxu0 0.0
  %666 = vmatprep.subr.mxu0 0.0
  %667 = vmatpush1.msra.mxu0 0.0
  %668 = vmatprep.subr.mxu0 0.0
  %669 = vmatpush1.msra.mxu0 0.0
  %670 = vmatprep.subr.mxu0 0.0
  %671 = vmatpush1.msra.mxu0 0.0
  %672 = vmatprep.subr.mxu0 0.0
  %673 = vmatpush1.msra.mxu0 0.0
  %674 = vmatprep.subr.mxu0 0.0
  %675 = vmatpush1.msra.mxu0 %v26
  %676 = vmatprep.subr.mxu0 0.0
  %677 = vmatpush1.msra.mxu0 %v25
  %678 = vmatprep.subr.mxu0 0.0
  %679 = vmatpush1.msra.mxu0 %v24
  %680 = vmatprep.subr.mxu0 0.0
  %681 = vmatpush1.msra.mxu0 %v23
  %682 = vmatprep.subr.mxu0 0.0
  %683 = vmatpush2.msra.mxu0 0.0
  %684 = vmatprep.subr.mxu0 0.0
  %685 = vmatpush2.msra.mxu0 0.0
  %686 = vmatprep.subr.mxu0 0.0
  %687 = vmatpush2.msra.mxu0 0.0
  %688 = vmatprep.subr.mxu0 0.0
  %689 = vmatpush2.msra.mxu0 0.0
  %690 = vmatprep.subr.mxu0 0.0
  %691 = vmatpush2.msra.mxu0 0.0
  %692 = vmatprep.subr.mxu0 0.0
  %693 = vmatpush2.msra.mxu0 0.0
  %694 = vmatprep.subr.mxu0 0.0
  %695 = vmatpush2.msra.mxu0 0.0
  %696 = vmatprep.subr.mxu0 0.0
  %697 = vmatpush2.msra.mxu0 0.0
  %698 = vmatprep.subr.mxu0 0.0
  %699 = vmatpush2.msra.mxu0 0.0
  %700 = vmatprep.subr.mxu0 0.0
  %701 = vmatpush2.msra.mxu0 0.0
  %702 = vmatprep.subr.mxu0 0.0
  %703 = vmatpush2.msra.mxu0 0.0
  %704 = vmatprep.subr.mxu0 0.0
  %705 = vmatpush2.msra.mxu0 0.0
  %706 = vmatprep.subr.mxu0 0.0
  %707 = vmatpush2.msra.mxu0 0.0
  %708 = vmatprep.subr.mxu0 0.0
  %709 = vmatpush2.msra.mxu0 0.0
  %710 = vmatprep.subr.mxu0 0.0
  %711 = vmatpush2.msra.mxu0 0.0
  %712 = vmatprep.subr.mxu0 0.0
  %713 = vmatpush2.msra.mxu0 0.0
  %714 = vmatprep.mubr.f32.mxu0 0.0
  %715 = vmatmul.mubr.f32.gmra.mxu0 %v648
  %v716 = vpop.f32.mrf.mxu0
  %v717 = vadd.f32 0.0, %v716
  %v718 = vpop.f32.mrf.mxu0
  %719 = vdwg.mxu0
  %v720 = vadd.f32 %v644, %v717
  %v721 = vxor.u32 %v720, 2147483648
  %v722 = vmul.f32 %v721, 1.442695
  %v723 = vpow.pop %v722
  %v724 = vadd.f32 %v723, 1.0
  %v725 = vrcp.pop %v724
  %v726 = vmul.f32 1.0, %v725
  %v727 = vtanh.pop %v720
  %v728 = vmul.f32 %v726, %v636
  %730 = vrot.lane.b32.xlu0 %v727, 64
  %v731 = vpop.permute.xlu0 %730
  %v733 = vmul.f32 %v726, %v731
  %735 = vrot.lane.b32.xlu0 %v733, 32
  %v736 = vpop.permute.xlu0 %735
  %v738 = vadd.f32 %v728, %v736
  %v739 = vtanh.pop %v738
  %741 = vrot.lane.b32.xlu0 %v739, 64
  %v742 = vpop.permute.xlu0 %741
  %v744 = vmul.f32 %v726, %v742
  %s745 = scalar_lea.vmem %s0, 56
  %v746 = vld [vmem:[%s745] sm:$0xff]
  %748 = vrot.lane.b32.xlu0 %v744, 32
  %v749 = vpop.permute.xlu0 %748
  %v750 = vsel %vm30, %v749, 0
  %752 = vmatprep.subr.mxu0 0.0
  %753 = vmatpush1.msra.mxu0 0.0
  %754 = vmatprep.subr.mxu0 0.0
  %755 = vmatpush1.msra.mxu0 0.0
  %756 = vmatprep.subr.mxu0 0.0
  %757 = vmatpush1.msra.mxu0 0.0
  %758 = vmatprep.subr.mxu0 0.0
  %759 = vmatpush1.msra.mxu0 0.0
  %760 = vmatprep.subr.mxu0 0.0
  %761 = vmatpush1.msra.mxu0 0.0
  %762 = vmatprep.subr.mxu0 0.0
  %763 = vmatpush1.msra.mxu0 0.0
  %764 = vmatprep.subr.mxu0 0.0
  %765 = vmatpush1.msra.mxu0 0.0
  %766 = vmatprep.subr.mxu0 0.0
  %767 = vmatpush1.msra.mxu0 0.0
  %768 = vmatprep.subr.mxu0 0.0
  %769 = vmatpush1.msra.mxu0 0.0
  %770 = vmatprep.subr.mxu0 0.0
  %771 = vmatpush1.msra.mxu0 0.0
  %772 = vmatprep.subr.mxu0 0.0
  %773 = vmatpush1.msra.mxu0 0.0
  %774 = vmatprep.subr.mxu0 0.0
  %775 = vmatpush1.msra.mxu0 0.0
  %776 = vmatprep.subr.mxu0 0.0
  %777 = vmatpush1.msra.mxu0 %v26
  %778 = vmatprep.subr.mxu0 0.0
  %779 = vmatpush1.msra.mxu0 %v25
  %780 = vmatprep.subr.mxu0 0.0
  %781 = vmatpush1.msra.mxu0 %v24
  %782 = vmatprep.subr.mxu0 0.0
  %783 = vmatpush1.msra.mxu0 %v23
  %784 = vmatprep.subr.mxu0 0.0
  %785 = vmatpush2.msra.mxu0 0.0
  %786 = vmatprep.subr.mxu0 0.0
  %787 = vmatpush2.msra.mxu0 0.0
  %788 = vmatprep.subr.mxu0 0.0
  %789 = vmatpush2.msra.mxu0 0.0
  %790 = vmatprep.subr.mxu0 0.0
  %791 = vmatpush2.msra.mxu0 0.0
  %792 = vmatprep.subr.mxu0 0.0
  %793 = vmatpush2.msra.mxu0 0.0
  %794 = vmatprep.subr.mxu0 0.0
  %795 = vmatpush2.msra.mxu0 0.0
  %796 = vmatprep.subr.mxu0 0.0
  %797 = vmatpush2.msra.mxu0 0.0
  %798 = vmatprep.subr.mxu0 0.0
  %799 = vmatpush2.msra.mxu0 0.0
  %800 = vmatprep.subr.mxu0 0.0
  %801 = vmatpush2.msra.mxu0 0.0
  %802 = vmatprep.subr.mxu0 0.0
  %803 = vmatpush2.msra.mxu0 0.0
  %804 = vmatprep.subr.mxu0 0.0
  %805 = vmatpush2.msra.mxu0 0.0
  %806 = vmatprep.subr.mxu0 0.0
  %807 = vmatpush2.msra.mxu0 0.0
  %808 = vmatprep.subr.mxu0 0.0
  %809 = vmatpush2.msra.mxu0 0.0
  %810 = vmatprep.subr.mxu0 0.0
  %811 = vmatpush2.msra.mxu0 0.0
  %812 = vmatprep.subr.mxu0 0.0
  %813 = vmatpush2.msra.mxu0 0.0
  %814 = vmatprep.subr.mxu0 0.0
  %815 = vmatpush2.msra.mxu0 0.0
  %816 = vmatprep.mubr.f32.mxu0 0.0
  %817 = vmatmul.mubr.f32.gmra.mxu0 %v750
  %v818 = vpop.f32.mrf.mxu0
  %v819 = vadd.f32 0.0, %v818
  %v820 = vpop.f32.mrf.mxu0
  %821 = vdwg.mxu0
  %v822 = vadd.f32 %v746, %v819
  %v823 = vxor.u32 %v822, 2147483648
  %v824 = vmul.f32 %v823, 1.442695
  %v825 = vpow.pop %v824
  %v826 = vadd.f32 %v825, 1.0
  %v827 = vrcp.pop %v826
  %v828 = vmul.f32 1.0, %v827
  %v829 = vtanh.pop %v822
  %v830 = vmul.f32 %v828, %v738
  %832 = vrot.lane.b32.xlu0 %v829, 64
  %v833 = vpop.permute.xlu0 %832
  %v835 = vmul.f32 %v828, %v833
  %837 = vrot.lane.b32.xlu0 %v835, 32
  %v838 = vpop.permute.xlu0 %837
  %v840 = vadd.f32 %v830, %v838
  %v841 = vtanh.pop %v840
  %843 = vrot.lane.b32.xlu0 %v841, 64
  %v844 = vpop.permute.xlu0 %843
  %v846 = vmul.f32 %v828, %v844
  %v847 = vld [vmem:[%s4] sm:$0xff]
  %v848 = vld [vmem:[%s4 + $0x8] sm:$0xff]
  %v849 = vld [vmem:[%s4 + $0x10] sm:$0xff]
  %v850 = vld [vmem:[%s4 + $0x18] sm:$0xff]
  %v851 = vld [vmem:[%s5] sm:$0x1]
  %v853 = vlaneseq
  %v854 = vshrl.u32 %v853, 7
  %v855 = vsub.s32 0, %v854
  %v856 = vrot.slane %v851, %v855
  %859 = vrot.lane.b32.xlu0 %v846, 32
  %v860 = vpop.permute.xlu0 %859
  %v861 = vsel %vm30, %v860, 0
  %863 = vmatprep.subr.mxu0 0.0
  %864 = vmatpush1.msra.mxu0 0.0
  %865 = vmatprep.subr.mxu0 0.0
  %866 = vmatpush1.msra.mxu0 0.0
  %867 = vmatprep.subr.mxu0 0.0
  %868 = vmatpush1.msra.mxu0 0.0
  %869 = vmatprep.subr.mxu0 0.0
  %870 = vmatpush1.msra.mxu0 0.0
  %871 = vmatprep.subr.mxu0 0.0
  %872 = vmatpush1.msra.mxu0 0.0
  %873 = vmatprep.subr.mxu0 0.0
  %874 = vmatpush1.msra.mxu0 0.0
  %875 = vmatprep.subr.mxu0 0.0
  %876 = vmatpush1.msra.mxu0 0.0
  %877 = vmatprep.subr.mxu0 0.0
  %878 = vmatpush1.msra.mxu0 0.0
  %879 = vmatprep.subr.mxu0 0.0
  %880 = vmatpush1.msra.mxu0 0.0
  %881 = vmatprep.subr.mxu0 0.0
  %882 = vmatpush1.msra.mxu0 0.0
  %883 = vmatprep.subr.mxu0 0.0
  %884 = vmatpush1.msra.mxu0 0.0
  %885 = vmatprep.subr.mxu0 0.0
  %886 = vmatpush1.msra.mxu0 0.0
  %887 = vmatprep.subr.mxu0 0.0
  %888 = vmatpush1.msra.mxu0 %v850
  %889 = vmatprep.subr.mxu0 0.0
  %890 = vmatpush1.msra.mxu0 %v849
  %891 = vmatprep.subr.mxu0 0.0
  %892 = vmatpush1.msra.mxu0 %v848
  %893 = vmatprep.subr.mxu0 0.0
  %894 = vmatpush1.msra.mxu0 %v847
  %895 = vmatprep.subr.mxu0 0.0
  %896 = vmatpush2.msra.mxu0 0.0
  %897 = vmatprep.subr.mxu0 0.0
  %898 = vmatpush2.msra.mxu0 0.0
  %899 = vmatprep.subr.mxu0 0.0
  %900 = vmatpush2.msra.mxu0 0.0
  %901 = vmatprep.subr.mxu0 0.0
  %902 = vmatpush2.msra.mxu0 0.0
  %903 = vmatprep.subr.mxu0 0.0
  %904 = vmatpush2.msra.mxu0 0.0
  %905 = vmatprep.subr.mxu0 0.0
  %906 = vmatpush2.msra.mxu0 0.0
  %907 = vmatprep.subr.mxu0 0.0
  %908 = vmatpush2.msra.mxu0 0.0
  %909 = vmatprep.subr.mxu0 0.0
  %910 = vmatpush2.msra.mxu0 0.0
  %911 = vmatprep.subr.mxu0 0.0
  %912 = vmatpush2.msra.mxu0 0.0
  %913 = vmatprep.subr.mxu0 0.0
  %914 = vmatpush2.msra.mxu0 0.0
  %915 = vmatprep.subr.mxu0 0.0
  %916 = vmatpush2.msra.mxu0 0.0
  %917 = vmatprep.subr.mxu0 0.0
  %918 = vmatpush2.msra.mxu0 0.0
  %919 = vmatprep.subr.mxu0 0.0
  %920 = vmatpush2.msra.mxu0 0.0
  %921 = vmatprep.subr.mxu0 0.0
  %922 = vmatpush2.msra.mxu0 0.0
  %923 = vmatprep.subr.mxu0 0.0
  %924 = vmatpush2.msra.mxu0 0.0
  %925 = vmatprep.subr.mxu0 0.0
  %926 = vmatpush2.msra.mxu0 0.0
  %927 = vmatprep.mubr.f32.mxu0 0.0
  %928 = vmatmul.mubr.f32.gmra.mxu0 %v861
  %v929 = vpop.f32.mrf.mxu0
  %v930 = vadd.f32 %v856, %v929
  %v931 = vpop.f32.mrf.mxu0
  %932 = vdwg.mxu0
  %933 = vst [vmem:[%s6] sm:$0xff] %v930
  // Predicated region
  $region26: #{forward.1} parent=0 // pred_check
    _
  $region27: #{forward.1} parent=0 // pred_check_branch
    %935 = sbr.rel (0) target = $region29
  $region28: #{forward.1} parent=0 // pred_region
    _
  $region29: #{forward.1} parent=0 // pred_fallthru
    _
  // Predicated region
  $region30: #{forward.1} parent=0 // pred_check
    _
  $region31: #{forward.1} parent=0 // pred_check_branch
    %937 = sbr.rel (0) target = $region33
  $region32: #{forward.1} parent=0 // pred_region
    _
  $region33: #{forward.1} parent=0 // pred_fallthru
    _

</llo_original>
